<compile_context>
chip_gen: v6e
topology: v6e:2x2x1
jax: 0.10.0
libtpu: 0.0.40
codegen_flags: <defaults>
</compile_context>

<pallas_src>
import functools

import jax
import jax.numpy as jnp
from jax.experimental import pallas as pl
from jax.experimental.pallas import tpu as pltpu


# ---------------------------------------------------------------------------
# Kernel: per-tile, per-class partial sums
#   loss[c] = sum over valid pixels in tile with target c of (lse - x[c])
#   cnt[c]  = number of valid pixels in tile with target c
#   bins[c] = torch.histc(target, bins=C, min=0, max=C) counts for this tile
# ---------------------------------------------------------------------------
def _imgce_kernel(x_ref, y_ref, loss_ref, cnt_ref, bins_ref, *,
                  num_classes, ignore_index):
    x = x_ref[0]                                    # (C, T) f32 logits
    y = y_ref[0]                                    # (1, T) i32 labels
    c, t = x.shape
    class_ids = jax.lax.broadcasted_iota(jnp.int32, (c, t), 0)

    valid = (y != ignore_index) & (y >= 0) & (y < num_classes)      # (1, T)
    onehot = (class_ids == y) & valid                               # (C, T)

    # log-softmax over the class (sublane) axis
    m = jnp.max(x, axis=0, keepdims=True)                           # (1, T)
    lse = m + jnp.log(jnp.sum(jnp.exp(x - m), axis=0, keepdims=True))
    x_t = jnp.sum(jnp.where(onehot, x, 0.0), axis=0, keepdims=True)  # logit @ target
    nll = jnp.where(valid, lse - x_t, 0.0)                          # (1, T)

    onehot_f = onehot.astype(jnp.float32)
    loss_ref[...] = jnp.sum(onehot_f * nll, axis=1, keepdims=True)[None, None]
    cnt_ref[...] = jnp.sum(onehot_f, axis=1, keepdims=True)[None, None]

    # torch.histc(target, bins=C, min=0, max=C): values in [0, C], value == C
    # goes to the last bin; anything else (ignore_index=255, pixel pad) dropped.
    in_range = (y >= 0) & (y <= num_classes)
    y_adj = jnp.where(y == num_classes, num_classes - 1, y)
    hist_oh = ((class_ids == y_adj) & in_range).astype(jnp.float32)
    bins_ref[...] = jnp.sum(hist_oh, axis=1, keepdims=True)[None, None]


# ---------------------------------------------------------------------------
# Wrapper matching the PyTorch module's forward semantics
# ---------------------------------------------------------------------------
class ImageBasedCrossEntropyLoss2d:
    def __init__(self, num_classes, norm=False, upper_bound=1.0,
                 loss_weight=1.0, loss_name="loss_imgwt_ce"):
        self.num_classes = num_classes
        self.norm = norm
        self.upper_bound = upper_bound
        self.loss_weight = loss_weight
        self._loss_name = loss_name

    @property
    def loss_name(self):
        return self._loss_name

    def __call__(self, cls_score, label, weight=None, ignore_index=255):
        del weight  # the PyTorch module ignores the passed weight and recomputes it
        n, c, h, w = cls_score.shape
        num_classes = self.num_classes
        hw = h * w

        # --- tiling: large pixel tiles, class axis kept at its natural size ---
        # cap the tile so a double-buffered logit block stays small in VMEM
        # (v5e scoped default is 16 MiB; this uses well under 2 MiB).
        t_target = min(8192, max(128, ((4 * 1024 * 1024) // (4 * c)) // 128 * 128))
        num_t = max(1, -(-hw // t_target))           # ceil(hw / t_target)
        t_hw = ((-(-hw // num_t)) + 127) // 128 * 128
        hwp = num_t * t_hw

        # metadata-only reshapes: NCHW already has H*W contiguous -> no transpose
        x = cls_score.reshape(n, c, hw).astype(jnp.float32)
        y = label.reshape(n, 1, hw).astype(jnp.int32)
        if hwp != hw:                                 # pad pixel axis only if needed
            x = jnp.pad(x, ((0, 0), (0, 0), (0, hwp - hw)))
            y = jnp.pad(y, ((0, 0), (0, 0), (0, hwp - hw)),
                        constant_values=ignore_index)

        grid = (n, num_t)
        part_shape = jax.ShapeDtypeStruct((n, num_t, c, 1), jnp.float32)
        part_spec = pl.BlockSpec((1, 1, c, 1), lambda ni, ti: (ni, ti, 0, 0))

        loss_p, cnt_p, bins_p = pl.pallas_call(
            functools.partial(_imgce_kernel, num_classes=num_classes,
                              ignore_index=ignore_index),
            out_shape=(part_shape, part_shape, part_shape),
            grid=grid,
            in_specs=[pl.BlockSpec((1, c, t_hw), lambda ni, ti: (ni, 0, ti)),
                      pl.BlockSpec((1, 1, t_hw), lambda ni, ti: (ni, 0, ti))],
            out_specs=(part_spec, part_spec, part_spec),
            compiler_params=pltpu.CompilerParams(
                # each grid step writes its own output block -> both axes can be
                # parallel (lets v7x megacore split the pixel / batch range).
                dimension_semantics=("parallel", "parallel")),
        )(x, y)

        # --- tiny per-class glue (num_classes values) -------------------------
        loss_c = jnp.sum(loss_p, axis=(0, 1))[:, 0]                    # (C,)
        # per-tile counts are exact integers in f32; sum them exactly as int32
        cnt_c = jnp.sum(cnt_p.astype(jnp.int32), axis=(0, 1))[:, 0].astype(jnp.float32)
        bins = jnp.sum(bins_p.astype(jnp.int32), axis=(0, 1))[:, 0].astype(jnp.float32)

        hist_norm = bins / jnp.sum(bins)
        nz = (bins != 0).astype(jnp.float32)
        if self.norm:
            wcls = nz * self.upper_bound * (1.0 / hist_norm) + 1.0
        else:
            wcls = nz * self.upper_bound * (1.0 - hist_norm) + 1.0

        # F.cross_entropy(weight=w, reduction='mean'):
        #   sum_i w[y_i]*nll_i / sum_i w[y_i]  ==  sum_c w_c*S_c / sum_c w_c*N_c
        num = jnp.sum(wcls * loss_c)
        den = jnp.sum(wcls * cnt_c)
        return self.loss_weight * num / den


# ---------------------------------------------------------------------------
# Pure-JAX reference for a sanity check
# ---------------------------------------------------------------------------
def _reference(cls_score, label, num_classes, norm, upper_bound, loss_weight,
               ignore_index=255):
    y = label.reshape(-1).astype(jnp.int32)
    x = jnp.transpose(cls_score, (0, 2, 3, 1)).reshape(-1, cls_score.shape[1])
    in_range = (y >= 0) & (y <= num_classes)
    y_adj = jnp.where(y == num_classes, num_classes - 1, y)
    bins = jnp.sum((y_adj[:, None] == jnp.arange(num_classes)[None, :]) & in_range[:, None],
                   axis=0).astype(jnp.float32)
    hist_norm = bins / jnp.sum(bins)
    nz = (bins != 0).astype(jnp.float32)
    if norm:
        w = nz * upper_bound * (1.0 / hist_norm) + 1.0
    else:
        w = nz * upper_bound * (1.0 - hist_norm) + 1.0
    logp = jax.nn.log_softmax(x, axis=-1)
    valid = (y != ignore_index)
    y_safe = jnp.where(valid, y, 0)
    nll = -jnp.take_along_axis(logp, y_safe[:, None], axis=-1)[:, 0]
    wt = w[y_safe] * valid.astype(jnp.float32)
    return loss_weight * jnp.sum(wt * nll) / jnp.sum(wt)


if __name__ == "__main__":
    key = jax.random.PRNGKey(0)
    k1, k2, k3 = jax.random.split(key, 3)

    num_classes = 19
    n, h, w = 2, 16, 16
    cls_score = jax.random.normal(k1, (n, num_classes, h, w), dtype=jnp.float32)
    label = jax.random.randint(k2, (n, h, w), 0, num_classes, dtype=jnp.int32)
    # sprinkle some ignore_index pixels
    ignore_mask = jax.random.uniform(k3, (n, h, w)) < 0.1
    label = jnp.where(ignore_mask, 255, label)

    loss_fn = ImageBasedCrossEntropyLoss2d(num_classes=num_classes,
                                           norm=False, upper_bound=1.0,
                                           loss_weight=1.0)
    loss = loss_fn(cls_score, label)
    loss = jax.block_until_ready(loss)

    ref = _reference(cls_score, label, num_classes, False, 1.0, 1.0)
    assert jnp.allclose(loss, ref, rtol=1e-3, atol=1e-4), (loss, ref)

    print("KERNEL_OK")
</pallas_src>

<mosaic_0001>
module attributes {stable_mosaic.version = 11 : i64} {
  func.func @_imgce_kernel(%arg0: i32, %arg1: i32, %arg2: memref<1x19x256xf32, #tpu.memory_space<vmem>>, %arg3: memref<1x1x256xi32, #tpu.memory_space<vmem>>, %arg4: memref<1x1x19x1xf32, #tpu.memory_space<vmem>>, %arg5: memref<1x1x19x1xf32, #tpu.memory_space<vmem>>, %arg6: memref<1x1x19x1xf32, #tpu.memory_space<vmem>>) attributes {dimension_semantics = [#tpu.dimension_semantics<parallel>, #tpu.dimension_semantics<parallel>], iteration_bounds = array<i64: 2, 1>, scalar_prefetch = 0 : i64, scratch_operands = 0 : i64, tpu.core_type = #tpu.core_type<tc>, window_params = [{transform_indices = @transform_0, window_bounds = array<i64: 1, 19, 256>}, {transform_indices = @transform_1, window_bounds = array<i64: 1, 1, 256>}, {transform_indices = @transform_2, window_bounds = array<i64: 1, 1, 19, 1>}, {transform_indices = @transform_3, window_bounds = array<i64: 1, 1, 19, 1>}, {transform_indices = @transform_4, window_bounds = array<i64: 1, 1, 19, 1>}]} {
    %c0 = arith.constant 0 : index
    %c0_0 = arith.constant 0 : index
    %c0_1 = arith.constant 0 : index
    %0 = vector.load %arg2[%c0, %c0_0, %c0_1] : memref<1x19x256xf32, #tpu.memory_space<vmem>>, vector<1x19x256xf32>
    %1 = vector.shape_cast %0 : vector<1x19x256xf32> to vector<19x256xf32>
    %c0_2 = arith.constant 0 : index
    %c0_3 = arith.constant 0 : index
    %c0_4 = arith.constant 0 : index
    %2 = vector.load %arg3[%c0_2, %c0_3, %c0_4] : memref<1x1x256xi32, #tpu.memory_space<vmem>>, vector<1x1x256xi32>
    %3 = vector.shape_cast %2 : vector<1x1x256xi32> to vector<1x256xi32>
    %4 = tpu.iota {dimensions = array<i32: 0>} : vector<19x256xi32>
    %c255_i32 = arith.constant 255 : i32
    %5 = vector.broadcast %c255_i32 : i32 to vector<1x256xi32>
    %6 = arith.cmpi ne, %3, %5 : vector<1x256xi32>
    %c0_i32 = arith.constant 0 : i32
    %7 = vector.broadcast %c0_i32 : i32 to vector<1x256xi32>
    %8 = arith.cmpi sge, %3, %7 : vector<1x256xi32>
    %9 = arith.andi %6, %8 : vector<1x256xi1>
    %c19_i32 = arith.constant 19 : i32
    %10 = vector.broadcast %c19_i32 : i32 to vector<1x256xi32>
    %11 = arith.cmpi slt, %3, %10 : vector<1x256xi32>
    %12 = arith.andi %9, %11 : vector<1x256xi1>
    %13 = vector.broadcast %3 : vector<1x256xi32> to vector<19x256xi32>
    %14 = arith.cmpi eq, %4, %13 : vector<19x256xi32>
    %15 = vector.broadcast %12 : vector<1x256xi1> to vector<19x256xi1>
    %16 = arith.andi %14, %15 : vector<19x256xi1>
    %cst = arith.constant dense<0xFF800000> : vector<256xf32>
    %17 = vector.multi_reduction <maximumf>, %1, %cst [0] : vector<19x256xf32> to vector<256xf32>
    %18 = vector.shape_cast %17 : vector<256xf32> to vector<1x256xf32>
    %19 = vector.broadcast %18 : vector<1x256xf32> to vector<19x256xf32>
    %20 = arith.subf %1, %19 : vector<19x256xf32>
    %21 = math.exp %20 : vector<19x256xf32>
    %cst_5 = arith.constant dense<0.000000e+00> : vector<256xf32>
    %22 = vector.multi_reduction <add>, %21, %cst_5 [0] : vector<19x256xf32> to vector<256xf32>
    %23 = vector.shape_cast %22 : vector<256xf32> to vector<1x256xf32>
    %24 = math.log %23 : vector<1x256xf32>
    %25 = arith.addf %18, %24 : vector<1x256xf32>
    %cst_6 = arith.constant 0.000000e+00 : f32
    %26 = vector.broadcast %cst_6 : f32 to vector<19x256xf32>
    %27 = arith.select %16, %1, %26 : vector<19x256xi1>, vector<19x256xf32>
    %cst_7 = arith.constant dense<0.000000e+00> : vector<256xf32>
    %28 = vector.multi_reduction <add>, %27, %cst_7 [0] : vector<19x256xf32> to vector<256xf32>
    %29 = vector.shape_cast %28 : vector<256xf32> to vector<1x256xf32>
    %30 = arith.subf %25, %29 : vector<1x256xf32>
    %cst_8 = arith.constant 0.000000e+00 : f32
    %31 = vector.broadcast %cst_8 : f32 to vector<1x256xf32>
    %32 = arith.select %12, %30, %31 : vector<1x256xi1>, vector<1x256xf32>
    %33 = arith.extui %16 : vector<19x256xi1> to vector<19x256xi32>
    %34 = arith.sitofp %33 : vector<19x256xi32> to vector<19x256xf32>
    %35 = vector.broadcast %32 : vector<1x256xf32> to vector<19x256xf32>
    %36 = arith.mulf %34, %35 : vector<19x256xf32>
    %cst_9 = arith.constant dense<0.000000e+00> : vector<19xf32>
    %37 = vector.multi_reduction <add>, %36, %cst_9 [1] : vector<19x256xf32> to vector<19xf32>
    %38 = vector.shape_cast %37 : vector<19xf32> to vector<19x1xf32>
    %39 = vector.shape_cast %38 : vector<19x1xf32> to vector<1x1x19x1xf32>
    %c0_10 = arith.constant 0 : index
    %c0_11 = arith.constant 0 : index
    %c0_12 = arith.constant 0 : index
    %c0_13 = arith.constant 0 : index
    %40 = vector.load %arg4[%c0_10, %c0_11, %c0_12, %c0_13] : memref<1x1x19x1xf32, #tpu.memory_space<vmem>>, vector<1x1x19x1xf32>
    tpu.vector_store %arg4[%c0_10, %c0_11, %c0_12, %c0_13], %39 {strides = array<i32>} : memref<1x1x19x1xf32, #tpu.memory_space<vmem>>, vector<1x1x19x1xf32>,
    %cst_14 = arith.constant dense<0.000000e+00> : vector<19xf32>
    %41 = vector.multi_reduction <add>, %34, %cst_14 [1] : vector<19x256xf32> to vector<19xf32>
    %42 = vector.shape_cast %41 : vector<19xf32> to vector<19x1xf32>
    %43 = vector.shape_cast %42 : vector<19x1xf32> to vector<1x1x19x1xf32>
    %c0_15 = arith.constant 0 : index
    %c0_16 = arith.constant 0 : index
    %c0_17 = arith.constant 0 : index
    %c0_18 = arith.constant 0 : index
    %44 = vector.load %arg5[%c0_15, %c0_16, %c0_17, %c0_18] : memref<1x1x19x1xf32, #tpu.memory_space<vmem>>, vector<1x1x19x1xf32>
    tpu.vector_store %arg5[%c0_15, %c0_16, %c0_17, %c0_18], %43 {strides = array<i32>} : memref<1x1x19x1xf32, #tpu.memory_space<vmem>>, vector<1x1x19x1xf32>,
    %c0_i32_19 = arith.constant 0 : i32
    %45 = vector.broadcast %c0_i32_19 : i32 to vector<1x256xi32>
    %46 = arith.cmpi sge, %3, %45 : vector<1x256xi32>
    %c19_i32_20 = arith.constant 19 : i32
    %47 = vector.broadcast %c19_i32_20 : i32 to vector<1x256xi32>
    %48 = arith.cmpi sle, %3, %47 : vector<1x256xi32>
    %49 = arith.andi %46, %48 : vector<1x256xi1>
    %c19_i32_21 = arith.constant 19 : i32
    %50 = vector.broadcast %c19_i32_21 : i32 to vector<1x256xi32>
    %51 = arith.cmpi eq, %3, %50 : vector<1x256xi32>
    %c18_i32 = arith.constant 18 : i32
    %52 = vector.broadcast %c18_i32 : i32 to vector<1x256xi32>
    %53 = arith.select %51, %52, %3 : vector<1x256xi1>, vector<1x256xi32>
    %54 = vector.broadcast %53 : vector<1x256xi32> to vector<19x256xi32>
    %55 = arith.cmpi eq, %4, %54 : vector<19x256xi32>
    %56 = vector.broadcast %49 : vector<1x256xi1> to vector<19x256xi1>
    %57 = arith.andi %55, %56 : vector<19x256xi1>
    %58 = arith.extui %57 : vector<19x256xi1> to vector<19x256xi32>
    %59 = arith.sitofp %58 : vector<19x256xi32> to vector<19x256xf32>
    %cst_22 = arith.constant dense<0.000000e+00> : vector<19xf32>
    %60 = vector.multi_reduction <add>, %59, %cst_22 [1] : vector<19x256xf32> to vector<19xf32>
    %61 = vector.shape_cast %60 : vector<19xf32> to vector<19x1xf32>
    %62 = vector.shape_cast %61 : vector<19x1xf32> to vector<1x1x19x1xf32>
    %c0_23 = arith.constant 0 : index
    %c0_24 = arith.constant 0 : index
    %c0_25 = arith.constant 0 : index
    %c0_26 = arith.constant 0 : index
    %63 = vector.load %arg6[%c0_23, %c0_24, %c0_25, %c0_26] : memref<1x1x19x1xf32, #tpu.memory_space<vmem>>, vector<1x1x19x1xf32>
    tpu.vector_store %arg6[%c0_23, %c0_24, %c0_25, %c0_26], %62 {strides = array<i32>} : memref<1x1x19x1xf32, #tpu.memory_space<vmem>>, vector<1x1x19x1xf32>,
    return
  }
  func.func @transform_0(%arg0: i32, %arg1: i32) -> (i32, i32, i32) {
    %c0_i32 = arith.constant 0 : i32
    %c0_i32_0 = arith.constant 0 : i32
    return %arg0, %c0_i32, %arg1 : i32, i32, i32
  }
  func.func @transform_1(%arg0: i32, %arg1: i32) -> (i32, i32, i32) {
    %c0_i32 = arith.constant 0 : i32
    %c0_i32_0 = arith.constant 0 : i32
    return %arg0, %c0_i32, %arg1 : i32, i32, i32
  }
  func.func @transform_2(%arg0: i32, %arg1: i32) -> (i32, i32, i32, i32) {
    %c0_i32 = arith.constant 0 : i32
    %c0_i32_0 = arith.constant 0 : i32
    %c0_i32_1 = arith.constant 0 : i32
    return %arg0, %arg1, %c0_i32, %c0_i32_0 : i32, i32, i32, i32
  }
  func.func @transform_3(%arg0: i32, %arg1: i32) -> (i32, i32, i32, i32) {
    %c0_i32 = arith.constant 0 : i32
    %c0_i32_0 = arith.constant 0 : i32
    %c0_i32_1 = arith.constant 0 : i32
    return %arg0, %arg1, %c0_i32, %c0_i32_0 : i32, i32, i32, i32
  }
  func.func @transform_4(%arg0: i32, %arg1: i32) -> (i32, i32, i32, i32) {
    %c0_i32 = arith.constant 0 : i32
    %c0_i32_0 = arith.constant 0 : i32
    %c0_i32_1 = arith.constant 0 : i32
    return %arg0, %arg1, %c0_i32, %c0_i32_0 : i32, i32, i32, i32
  }
}

</mosaic_0001>

<llo_original>
// kernel: tpu_custom_call.1
$region0: #{tpu_custom_call.1}
  #allocation0 [shape = 'u32[]', space=smem, size = 0x4, offset = 0x4, fixed_abs, tag = 'smem constant byte address 0x4 - core index']
  #allocation1 [shape = 'u32[144,128]{1,0:T(1,128)}', space=vmem, size = 0x12000, scoped, tag = 'internal scratch']
  %s0 = inlined_call_operand.vmem [shape: f32[2,19,256], index: 0, kind: input, shape index: {}]
  %s1 = inlined_call_operand.vmem [shape: s32[2,1,256], index: 1, kind: input, shape index: {}]
  %s2 = inlined_call_operand.vmem [shape: f32[2,1,19,1], index: 2, kind: output, shape index: {0}]
  %s3 = inlined_call_operand.vmem [shape: f32[2,1,19,1], index: 3, kind: output, shape index: {1}]
  %s4 = inlined_call_operand.vmem [shape: f32[2,1,19,1], index: 4, kind: output, shape index: {2}]
  %5 = xla_tuple %s2, %s3, %s4
  %s6 = sld [smem:[#allocation0]]
  $region57: #{tpu_custom_call.1} parent=0
    _
  %s8 = ssub.s32 1, %s6
  %s9 = scalar_select 0, %s8, %s6
  loop: start=0, step=1, limit=4
  $region2: #{tpu_custom_call.1} parent=0 // loop_pre_header
    _
  $region3: #{tpu_custom_call.1} parent=0 // loop_header
    %s11 = sphi 0, %s15
    %p12 = scmp.ge.s32.totalorder %s11, 4
    %s18 = sphi 0, %s30
    %s19 = sphi 0, %s26
    %s20 = sphi 0, %s18
    %s21 = sphi 0, %s19
    %s22 = sphi 0, %s20
    %s23 = sphi 0, %s21
    %s35 = sphi 0, %s37
    %s38 = sphi 0, %s35
    %s39 = sphi 0, %s38
    %s55 = sphi 0, %s39
    %s63 = sphi 0, %s65
    %s66 = sphi 0, %s63
    %s67 = sphi 0, %s66
    %s83 = sphi 0, %s67
    %s91 = sphi 0, %s93
    %s94 = sphi 0, %s91
    %s95 = sphi 0, %s94
    %s111 = sphi 0, %s95
    %s119 = sphi 0, %s121
    %s122 = sphi 0, %s119
    %s123 = sphi 0, %s122
    %s139 = sphi 0, %s123
    %s147 = sphi 0, %s149
    %s150 = sphi 0, %s147
    %s151 = sphi 0, %s150
    %s167 = sphi 0, %s151
  $region4: #{tpu_custom_call.1} parent=0 // loop_header_branch
    %14 = sbr.rel (%p12) target = $region8
  $region5: #{tpu_custom_call.1} parent=0 // loop_body
    %s16 = ssub.s32 %s11, 1
    %s17 = ssub.s32 %s11, 2
    %s24 = sadd.s32 1, %s19
    %p25 = scmp.ge.s32.totalorder %s24, 1
    %s26 = scalar_select %p25, 0, %s24
    %s27 = sadd.s32 1, %s18
    %s28 = scalar_select %p25, %s27, %s18
    %p29 = scmp.ge.s32.totalorder %s28, 2
    %s30 = scalar_select %p29, 0, %s28
    %s31 = ssub.s32 %s18, %s30
    %s32 = ssub.s32 %s19, %s26
    %s33 = sor.u32 %s31, %s32
    %p34 = scmp.eq.s32.totalorder %s33, 0
    %s36 = sadd.s32 %s35, 1
    %s37 = scalar_select %p34, %s35, %s36
    %p40 = pneg %p34
    %p41 = scmp.eq.s32.totalorder %s11, 1
    %p42 = por %p40, %p41
    %p43 = scmp.ne.s32.totalorder %s35, %s38
    %p44 = scmp.eq.s32.totalorder %s11, 0
    %p45 = por %p43, %p44
    %p46 = scmp.ne.s32.totalorder %s35, %s38
    %p47 = scmp.eq.s32.totalorder %s16, 1
    %p48 = por %p46, %p47
    %p49 = scmp.ne.s32.totalorder %s38, %s39
    %p50 = scmp.eq.s32.totalorder %s16, 0
    %p51 = por %p49, %p50
    %p52 = scmp.ne.s32.totalorder %s38, %s39
    %p53 = scmp.eq.s32.totalorder %s17, 1
    %p54 = por %p52, %p53
    %p56 = scmp.ne.s32.totalorder %s39, %s55
    %p57 = scmp.eq.s32.totalorder %s17, 0
    %p58 = por %p56, %p57
    %s59 = ssub.s32 %s18, %s30
    %s60 = ssub.s32 %s19, %s26
    %s61 = sor.u32 %s59, %s60
    %p62 = scmp.eq.s32.totalorder %s61, 0
    %s64 = sadd.s32 %s63, 1
    %s65 = scalar_select %p62, %s63, %s64
    %p68 = pneg %p62
    %p69 = scmp.eq.s32.totalorder %s11, 1
    %p70 = por %p68, %p69
    %p71 = scmp.ne.s32.totalorder %s63, %s66
    %p72 = scmp.eq.s32.totalorder %s11, 0
    %p73 = por %p71, %p72
    %p74 = scmp.ne.s32.totalorder %s63, %s66
    %p75 = scmp.eq.s32.totalorder %s16, 1
    %p76 = por %p74, %p75
    %p77 = scmp.ne.s32.totalorder %s66, %s67
    %p78 = scmp.eq.s32.totalorder %s16, 0
    %p79 = por %p77, %p78
    %p80 = scmp.ne.s32.totalorder %s66, %s67
    %p81 = scmp.eq.s32.totalorder %s17, 1
    %p82 = por %p80, %p81
    %p84 = scmp.ne.s32.totalorder %s67, %s83
    %p85 = scmp.eq.s32.totalorder %s17, 0
    %p86 = por %p84, %p85
    %s87 = ssub.s32 %s18, %s30
    %s88 = ssub.s32 %s19, %s26
    %s89 = sor.u32 %s87, %s88
    %p90 = scmp.eq.s32.totalorder %s89, 0
    %s92 = sadd.s32 %s91, 1
    %s93 = scalar_select %p90, %s91, %s92
    %p96 = pneg %p90
    %p97 = scmp.eq.s32.totalorder %s11, 1
    %p98 = por %p96, %p97
    %p99 = scmp.ne.s32.totalorder %s91, %s94
    %p100 = scmp.eq.s32.totalorder %s11, 0
    %p101 = por %p99, %p100
    %p102 = scmp.ne.s32.totalorder %s91, %s94
    %p103 = scmp.eq.s32.totalorder %s16, 1
    %p104 = por %p102, %p103
    %p105 = scmp.ne.s32.totalorder %s94, %s95
    %p106 = scmp.eq.s32.totalorder %s16, 0
    %p107 = por %p105, %p106
    %p108 = scmp.ne.s32.totalorder %s94, %s95
    %p109 = scmp.eq.s32.totalorder %s17, 1
    %p110 = por %p108, %p109
    %p112 = scmp.ne.s32.totalorder %s95, %s111
    %p113 = scmp.eq.s32.totalorder %s17, 0
    %p114 = por %p112, %p113
    %s115 = ssub.s32 %s18, %s30
    %s116 = ssub.s32 %s19, %s26
    %s117 = sor.u32 %s115, %s116
    %p118 = scmp.eq.s32.totalorder %s117, 0
    %s120 = sadd.s32 %s119, 1
    %s121 = scalar_select %p118, %s119, %s120
    %p124 = pneg %p118
    %p125 = scmp.eq.s32.totalorder %s11, 1
    %p126 = por %p124, %p125
    %p127 = scmp.ne.s32.totalorder %s119, %s122
    %p128 = scmp.eq.s32.totalorder %s11, 0
    %p129 = por %p127, %p128
    %p130 = scmp.ne.s32.totalorder %s119, %s122
    %p131 = scmp.eq.s32.totalorder %s16, 1
    %p132 = por %p130, %p131
    %p133 = scmp.ne.s32.totalorder %s122, %s123
    %p134 = scmp.eq.s32.totalorder %s16, 0
    %p135 = por %p133, %p134
    %p136 = scmp.ne.s32.totalorder %s122, %s123
    %p137 = scmp.eq.s32.totalorder %s17, 1
    %p138 = por %p136, %p137
    %p140 = scmp.ne.s32.totalorder %s123, %s139
    %p141 = scmp.eq.s32.totalorder %s17, 0
    %p142 = por %p140, %p141
    %s143 = ssub.s32 %s18, %s30
    %s144 = ssub.s32 %s19, %s26
    %s145 = sor.u32 %s143, %s144
    %p146 = scmp.eq.s32.totalorder %s145, 0
    %s148 = sadd.s32 %s147, 1
    %s149 = scalar_select %p146, %s147, %s148
    %p152 = pneg %p146
    %p153 = scmp.eq.s32.totalorder %s11, 1
    %p154 = por %p152, %p153
    %p155 = scmp.ne.s32.totalorder %s147, %s150
    %p156 = scmp.eq.s32.totalorder %s11, 0
    %p157 = por %p155, %p156
    %p158 = scmp.ne.s32.totalorder %s147, %s150
    %p159 = scmp.eq.s32.totalorder %s16, 1
    %p160 = por %p158, %p159
    %p161 = scmp.ne.s32.totalorder %s150, %s151
    %p162 = scmp.eq.s32.totalorder %s16, 0
    %p163 = por %p161, %p162
    %p164 = scmp.ne.s32.totalorder %s150, %s151
    %p165 = scmp.eq.s32.totalorder %s17, 1
    %p166 = por %p164, %p165
    %p168 = scmp.ne.s32.totalorder %s151, %s167
    %p169 = scmp.eq.s32.totalorder %s17, 0
    %p170 = por %p168, %p169
    %p171 = scmp.le.s32.totalorder 1, %s11
    %p172 = scmp.lt.s32.totalorder %s11, 3
    %p173 = pnand %p171, %p172
    %p174 = pneg %p173
    // Predicated region
    $region9: #{tpu_custom_call.1} parent=5 // pred_check
      _
    $region10: #{tpu_custom_call.1} parent=5 // pred_check_branch
      %176 = sbr.rel (%p173) target = $region12
    $region11: #{tpu_custom_call.1} parent=5 // pred_region
      %s177 = ssub.s32 %s11, 1
    $region12: #{tpu_custom_call.1} parent=5 // pred_fallthru
      _
    %p178 = scmp.lt.s32.totalorder %s11, 2
    // Predicated region
    $region13: #{tpu_custom_call.1} parent=5 // pred_check
      %p179 = pneg %p178
    $region14: #{tpu_custom_call.1} parent=5 // pred_check_branch
      %181 = sbr.rel (%p179) target = $region16
    $region15: #{tpu_custom_call.1} parent=5 // pred_region
      // Predicated region
      $region17: #{tpu_custom_call.1} parent=15 // pred_check
        %p182 = pneg %p45
      $region18: #{tpu_custom_call.1} parent=15 // pred_check_branch
        %184 = sbr.rel (%p182) target = $region20
      $region19: #{tpu_custom_call.1} parent=15 // pred_region
        %s185 = smul.u32 2, %s19
        %p186 = scmp.lt.s32.totalorder %s18, 1
        %s187 = scalar_select %p186, %s18, 1
        %p188 = scmp.lt.s32.totalorder %s185, 1
        %s189 = scalar_select %p188, %s185, 1
        %s190 = smul.addr %s187, 6
        %s191 = sadd.s32 %s189, %s190
        %s192 = smul.addr %s191, 8
        %s193 = scalar_lea.vmem %s0, %s192
        %s194 = smul.u32 2, %s19
      $region20: #{tpu_custom_call.1} parent=15 // pred_fallthru
        _
      // Predicated region
      $region21: #{tpu_custom_call.1} parent=15 // pred_check
        %p195 = pneg %p73
      $region22: #{tpu_custom_call.1} parent=15 // pred_check_branch
        %197 = sbr.rel (%p195) target = $region24
      $region23: #{tpu_custom_call.1} parent=15 // pred_region
        %s198 = smul.u32 2, %s19
        %p199 = scmp.lt.s32.totalorder %s18, 1
        %s200 = scalar_select %p199, %s18, 1
        %p201 = scmp.lt.s32.totalorder %s198, 1
        %s202 = scalar_select %p201, %s198, 1
        %s203 = smul.addr %s200, 2
        %s204 = sadd.s32 %s202, %s203
        %s205 = scalar_lea.vmem %s1, %s204
        %s206 = smul.u32 2, %s19
      $region24: #{tpu_custom_call.1} parent=15 // pred_fallthru
        _
    $region16: #{tpu_custom_call.1} parent=5 // pred_fallthru
      _
    %p207 = scmp.le.s32.totalorder 1, %s11
    %p208 = scmp.lt.s32.totalorder %s11, 3
    %p209 = pnand %p207, %p208
    %p210 = pneg %p209
    // Predicated region
    $region25: #{tpu_custom_call.1} parent=5 // pred_check
      _
    $region26: #{tpu_custom_call.1} parent=5 // pred_check_branch
      %212 = sbr.rel (%p209) target = $region28
    $region27: #{tpu_custom_call.1} parent=5 // pred_region
      %s213 = ssub.s32 %s11, 1
      %s214 = smul.u32 2, %s21
      %p215 = scmp.lt.s32.totalorder %s20, 1
      %s216 = scalar_select %p215, %s20, 1
      %p217 = scmp.lt.s32.totalorder %s214, 1
      %s218 = scalar_select %p217, %s214, 1
      %s219 = smul.addr %s216, 6
      %s220 = sadd.s32 %s218, %s219
      %s221 = smul.addr %s220, 8
      %s222 = scalar_lea.vmem %s0, %s221
      %p223 = pneg %p51
      %p224 = pneg %p48
      %s225 = smul.u32 2, %s21
      %p226 = scmp.lt.s32.totalorder %s20, 1
      %s227 = scalar_select %p226, %s20, 1
      %p228 = scmp.lt.s32.totalorder %s225, 1
      %s229 = scalar_select %p228, %s225, 1
      %s230 = smul.addr %s227, 2
      %s231 = sadd.s32 %s229, %s230
      %s232 = scalar_lea.vmem %s1, %s231
      %p233 = pneg %p79
      %p234 = pneg %p76
      %p235 = pneg %p107
      %p236 = pneg %p104
      %p237 = scmp.lt.s32.totalorder %s20, 1
      %s238 = scalar_select %p237, %s20, 1
      %p239 = scmp.lt.s32.totalorder %s21, 0
      %s240 = scalar_select %p239, %s21, 0
      %s241 = smul.addr %s240, 3
      %s242 = smul.addr %s238, 3
      %s243 = sadd.s32 %s241, %s242
      %s244 = smul.addr %s243, 8
      %s245 = scalar_lea.vmem %s2, %s244
      %p246 = pneg %p135
      %p247 = pneg %p132
      %p248 = scmp.lt.s32.totalorder %s20, 1
      %s249 = scalar_select %p248, %s20, 1
      %p250 = scmp.lt.s32.totalorder %s21, 0
      %s251 = scalar_select %p250, %s21, 0
      %s252 = smul.addr %s251, 3
      %s253 = smul.addr %s249, 3
      %s254 = sadd.s32 %s252, %s253
      %s255 = smul.addr %s254, 8
      %s256 = scalar_lea.vmem %s3, %s255
      %p257 = pneg %p163
      %p258 = pneg %p160
      %p259 = scmp.lt.s32.totalorder %s20, 1
      %s260 = scalar_select %p259, %s20, 1
      %p261 = scmp.lt.s32.totalorder %s21, 0
      %s262 = scalar_select %p261, %s21, 0
      %s263 = smul.addr %s262, 3
      %s264 = smul.addr %s260, 3
      %s265 = sadd.s32 %s263, %s264
      %s266 = smul.addr %s265, 8
      %s267 = scalar_lea.vmem %s4, %s266
      %s268 = smul.u32 2, %s21
      %p269 = scmp.lt.s32.totalorder %s20, 1
      %s270 = scalar_select %p269, %s20, 1
      %p271 = scmp.lt.s32.totalorder %s268, 1
      %s272 = scalar_select %p271, %s268, 1
      %s273 = smul.addr %s270, 6
      %s274 = sadd.s32 %s272, %s273
      %s275 = smul.addr %s274, 8
      %s276 = scalar_lea.vmem %s0, %s275
      %s277 = smul.u32 2, %s21
      %s278 = smul.u32 2, %s21
      %p279 = scmp.lt.s32.totalorder %s20, 1
      %s280 = scalar_select %p279, %s20, 1
      %p281 = scmp.lt.s32.totalorder %s278, 1
      %s282 = scalar_select %p281, %s278, 1
      %s283 = smul.addr %s280, 2
      %s284 = sadd.s32 %s282, %s283
      %s285 = scalar_lea.vmem %s1, %s284
      %s286 = smul.u32 2, %s21
      %p287 = scmp.lt.s32.totalorder %s20, 1
      %s288 = scalar_select %p287, %s20, 1
      %p289 = scmp.lt.s32.totalorder %s21, 0
      %s290 = scalar_select %p289, %s21, 0
      %s291 = smul.addr %s290, 3
      %s292 = smul.addr %s288, 3
      %s293 = sadd.s32 %s291, %s292
      %s294 = smul.addr %s293, 8
      %s295 = scalar_lea.vmem %s2, %s294
      %p296 = scmp.lt.s32.totalorder %s20, 1
      %s297 = scalar_select %p296, %s20, 1
      %p298 = scmp.lt.s32.totalorder %s21, 0
      %s299 = scalar_select %p298, %s21, 0
      %s300 = smul.addr %s299, 3
      %s301 = smul.addr %s297, 3
      %s302 = sadd.s32 %s300, %s301
      %s303 = smul.addr %s302, 8
      %s304 = scalar_lea.vmem %s3, %s303
      %p305 = scmp.lt.s32.totalorder %s20, 1
      %s306 = scalar_select %p305, %s20, 1
      %p307 = scmp.lt.s32.totalorder %s21, 0
      %s308 = scalar_select %p307, %s21, 0
      %s309 = smul.addr %s308, 3
      %s310 = smul.addr %s306, 3
      %s311 = sadd.s32 %s309, %s310
      %s312 = smul.addr %s311, 8
      %s313 = scalar_lea.vmem %s4, %s312
      %v314 = vld [vmem:[%s276] sm:$0xff]
      %v315 = vld [vmem:[%s276 + $0x8] sm:$0xff]
      %v316 = vld [vmem:[%s276 + $0x10] sm:$0xff]
      %v317 = vld [vmem:[%s276 + $0x18] sm:$0xff]
      %v318 = vld [vmem:[%s276 + $0x20] sm:$0x7]
      %v319 = vld [vmem:[%s276 + $0x28] sm:$0x7]
      %v320 = vld [vmem:[%s285] sm:$0x3]
      %v321 = vlaneseq
      %v322 = vshrl.u32 %v321, 7
      %v323 = vadd.s32 %v322, 8
      %v324 = vadd.s32 %v322, 16
      %vm325 = vcmp.ne.s32.totalorder %v320, 255
      %vm326 = vcmp.ge.s32.totalorder %v320, 0
      %vm327 = vmand %vm325, %vm326
      %vm328 = vcmp.lt.s32.totalorder %v320, 19
      %vm329 = vmand %vm327, %vm328
      %v330 = vlaneseq
      %v331 = vshrl.u32 %v330, 7
      %v332 = vsub.s32 0, %v331
      %v333 = vrot.slane %v320, %v332
      %v334 = vlaneseq
      %v335 = vshrl.u32 %v334, 7
      %v336 = vsub.s32 1, %v335
      %v337 = vrot.slane %v320, %v336
      %vm338 = vcmp.eq.s32.totalorder %v322, %v333
      %vm339 = vcmp.eq.s32.totalorder %v322, %v337
      %vm340 = vcmp.eq.s32.totalorder %v323, %v333
      %vm341 = vcmp.eq.s32.totalorder %v323, %v337
      %vm342 = vcmp.eq.s32.totalorder %v324, %v333
      %vm343 = vcmp.eq.s32.totalorder %v324, %v337
      %v344 = vsel %vm329, 1, 0
      %v345 = vlaneseq
      %v346 = vshrl.u32 %v345, 7
      %v347 = vsub.s32 0, %v346
      %v348 = vrot.slane %v344, %v347
      %v349 = vlaneseq
      %v350 = vshrl.u32 %v349, 7
      %v351 = vsub.s32 1, %v350
      %v352 = vrot.slane %v344, %v351
      %vm353 = vcmp.eq.s32.totalorder %v348, 1
      %vm354 = vcmp.eq.s32.totalorder %v352, 1
      %vm355 = vmand %vm338, %vm353
      %vm356 = vmand %vm339, %vm354
      %vm357 = vmand %vm340, %vm353
      %vm358 = vmand %vm341, %vm354
      %vm359 = vmand %vm342, %vm353
      %vm360 = vmand %vm343, %vm354
      %vm361 = vcmask 1042432
      %v362 = vsel %vm361, %v318, -inf
      %v363 = vmax.f32 %v314, %v362
      %v364 = vmax.f32 %v363, %v316
      %v365 = vrot.slane %v364, 4
      %v366 = vmax.f32 %v364, %v365
      %v367 = vrot.slane %v366, 2
      %v368 = vmax.f32 %v366, %v367
      %v369 = vrot.slane %v368, 1
      %v370 = vmax.f32 %v368, %v369
      %v371 = vsel %vm361, %v319, -inf
      %v372 = vmax.f32 %v315, %v371
      %v373 = vmax.f32 %v372, %v317
      %v374 = vrot.slane %v373, 4
      %v375 = vmax.f32 %v373, %v374
      %v376 = vrot.slane %v375, 2
      %v377 = vmax.f32 %v375, %v376
      %v378 = vrot.slane %v377, 1
      %v379 = vmax.f32 %v377, %v378
      %v380 = vsub.f32 %v314, %v370
      %v381 = vsub.f32 %v315, %v379
      %v382 = vsub.f32 %v316, %v370
      %v383 = vsub.f32 %v317, %v379
      %v384 = vsub.f32 %v318, %v370
      %v385 = vsub.f32 %v319, %v379
      %v386 = vmul.f32 %v380, 1.442695
      %v387 = vpow.pop %v386
      %v388 = vmul.f32 %v381, 1.442695
      %v389 = vpow.pop %v388
      %v390 = vmul.f32 %v382, 1.442695
      %v391 = vpow.pop %v390
      %v392 = vmul.f32 %v383, 1.442695
      %v393 = vpow.pop %v392
      %v394 = vmul.f32 %v384, 1.442695
      %v395 = vpow.pop %v394
      %v396 = vmul.f32 %v385, 1.442695
      %v397 = vpow.pop %v396
      %v398 = vadd.f32 %v387, %v391
      %v399 = vsel %vm361, %v395, 0.0
      %v400 = vadd.f32 %v398, %v399
      %v401 = vrot.slane %v400, 4
      %v402 = vadd.f32 %v400, %v401
      %v403 = vrot.slane %v402, 2
      %v404 = vadd.f32 %v402, %v403
      %v405 = vrot.slane %v404, 1
      %v406 = vadd.f32 %v404, %v405
      %v407 = vadd.f32 %v389, %v393
      %v408 = vsel %vm361, %v397, 0.0
      %v409 = vadd.f32 %v407, %v408
      %v410 = vrot.slane %v409, 4
      %v411 = vadd.f32 %v409, %v410
      %v412 = vrot.slane %v411, 2
      %v413 = vadd.f32 %v411, %v412
      %v414 = vrot.slane %v413, 1
      %v415 = vadd.f32 %v413, %v414
      %v416 = vlog2.pop %v406
      %v417 = vmul.f32 %v416, 0.6931472
      %v418 = vlog2.pop %v415
      %v419 = vmul.f32 %v418, 0.6931472
      %v420 = vadd.f32 %v370, %v417
      %v421 = vadd.f32 %v379, %v419
      %v422 = vsel %vm355, %v314, 0.0
      %v423 = vsel %vm356, %v315, 0.0
      %v424 = vsel %vm357, %v316, 0.0
      %v425 = vsel %vm358, %v317, 0.0
      %v426 = vsel %vm359, %v318, 0.0
      %v427 = vsel %vm360, %v319, 0.0
      %v428 = vadd.f32 %v422, %v424
      %v429 = vsel %vm361, %v426, 0.0
      %v430 = vadd.f32 %v428, %v429
      %v431 = vrot.slane %v430, 4
      %v432 = vadd.f32 %v430, %v431
      %v433 = vrot.slane %v432, 2
      %v434 = vadd.f32 %v432, %v433
      %v435 = vrot.slane %v434, 1
      %v436 = vadd.f32 %v434, %v435
      %v437 = vadd.f32 %v423, %v425
      %v438 = vsel %vm361, %v427, 0.0
      %v439 = vadd.f32 %v437, %v438
      %v440 = vrot.slane %v439, 4
      %v441 = vadd.f32 %v439, %v440
      %v442 = vrot.slane %v441, 2
      %v443 = vadd.f32 %v441, %v442
      %v444 = vrot.slane %v443, 1
      %v445 = vadd.f32 %v443, %v444
      %v446 = vsub.f32 %v420, %v436
      %v447 = vsub.f32 %v421, %v445
      %v450 = vcombine.low %v446, %v447
      %v452 = vunpack.c.l.s4 1966171168
      %v453 = vunpack.c.0.s8 %v452
      %v454 = vlaneseq
      %v455 = vshrl.u32 %v454, 7
      %v456 = vsub.s32 %v453, %v455
      %v457 = vrot.slane %v450, %v456
      %v459 = vunpack.c.l.s4 1966171168
      %v460 = vunpack.c.0.s8 %v459
      %v461 = vlaneseq
      %v462 = vshrl.u32 %v461, 7
      %v463 = vsub.s32 %v460, %v462
      %v464 = vrot.slane %v457, %v463
      %v466 = vsel %vm329, %v464, 0.0
      %v467 = vsel %vm355, 1, 0
      %v468 = vsel %vm356, 1, 0
      %v469 = vsel %vm357, 1, 0
      %v470 = vsel %vm358, 1, 0
      %v471 = vsel %vm359, 1, 0
      %v472 = vsel %vm360, 1, 0
      %v473 = vcvt.s32.f32 %v467
      %v474 = vcvt.s32.f32 %v468
      %v475 = vcvt.s32.f32 %v469
      %v476 = vcvt.s32.f32 %v470
      %v477 = vcvt.s32.f32 %v471
      %v478 = vcvt.s32.f32 %v472
      %v480 = vlaneseq
      %v481 = vshrl.u32 %v480, 7
      %v482 = vsub.s32 0, %v481
      %v483 = vrot.slane %v466, %v482
      %v484 = vlaneseq
      %v485 = vshrl.u32 %v484, 7
      %v486 = vsub.s32 1, %v485
      %v487 = vrot.slane %v466, %v486
      %v490 = vmul.f32 %v473, %v483
      %v491 = vmul.f32 %v474, %v487
      %v492 = vmul.f32 %v475, %v483
      %v493 = vmul.f32 %v476, %v487
      %v494 = vmul.f32 %v477, %v483
      %v495 = vmul.f32 %v478, %v487
      %v496 = vadd.f32 %v490, %v491
      %497 = vadd.xlane.f32.xlu0 %v496
      %v498 = vpop.xlane.xlu0 %497
      %v499 = vadd.f32 %v492, %v493
      %500 = vadd.xlane.f32.xlu0 %v499
      %v501 = vpop.xlane.xlu0 %500
      %v502 = vsel %vm361, %v494, 0.0
      %v503 = vsel %vm361, %v495, 0.0
      %v504 = vadd.f32 %v502, %v503
      %505 = vadd.xlane.f32.xlu0 %v504
      %v506 = vpop.xlane.xlu0 %505
      %vm507 = vcmask 7168
      %508 = vst.msk [vmem:[%s295] sm:$0xff] %vm507, %v498
      %509 = vst.msk [vmem:[%s295 + $0x8] sm:$0xff] %vm507, %v501
      %vm510 = vcmask 2048
      %511 = vst.msk [vmem:[%s295 + $0x10] sm:$0x7] %vm510, %v506
      %v512 = vadd.f32 %v473, %v474
      %513 = vadd.xlane.f32.xlu0 %v512
      %v514 = vpop.xlane.xlu0 %513
      %v515 = vadd.f32 %v475, %v476
      %516 = vadd.xlane.f32.xlu0 %v515
      %v517 = vpop.xlane.xlu0 %516
      %v518 = vsel %vm361, %v477, 0.0
      %v519 = vsel %vm361, %v478, 0.0
      %v520 = vadd.f32 %v518, %v519
      %521 = vadd.xlane.f32.xlu0 %v520
      %v522 = vpop.xlane.xlu0 %521
      %523 = vst.msk [vmem:[%s304] sm:$0xff] %vm507, %v514
      %524 = vst.msk [vmem:[%s304 + $0x8] sm:$0xff] %vm507, %v517
      %525 = vst.msk [vmem:[%s304 + $0x10] sm:$0x7] %vm510, %v522
      %vm526 = vcmp.le.s32.totalorder %v320, 19
      %vm527 = vmand %vm326, %vm526
      %vm528 = vcmp.eq.s32.totalorder %v320, 19
      %v529 = vsel %vm528, 18, %v320
      %v530 = vlaneseq
      %v531 = vshrl.u32 %v530, 7
      %v532 = vsub.s32 0, %v531
      %v533 = vrot.slane %v529, %v532
      %v534 = vlaneseq
      %v535 = vshrl.u32 %v534, 7
      %v536 = vsub.s32 1, %v535
      %v537 = vrot.slane %v529, %v536
      %vm538 = vcmp.eq.s32.totalorder %v322, %v533
      %vm539 = vcmp.eq.s32.totalorder %v322, %v537
      %vm540 = vcmp.eq.s32.totalorder %v323, %v533
      %vm541 = vcmp.eq.s32.totalorder %v323, %v537
      %vm542 = vcmp.eq.s32.totalorder %v324, %v533
      %vm543 = vcmp.eq.s32.totalorder %v324, %v537
      %v544 = vsel %vm527, 1, 0
      %v545 = vlaneseq
      %v546 = vshrl.u32 %v545, 7
      %v547 = vsub.s32 0, %v546
      %v548 = vrot.slane %v544, %v547
      %v549 = vlaneseq
      %v550 = vshrl.u32 %v549, 7
      %v551 = vsub.s32 1, %v550
      %v552 = vrot.slane %v544, %v551
      %vm553 = vcmp.eq.s32.totalorder %v548, 1
      %vm554 = vcmp.eq.s32.totalorder %v552, 1
      %vm555 = vmand %vm538, %vm553
      %vm556 = vmand %vm539, %vm554
      %vm557 = vmand %vm540, %vm553
      %vm558 = vmand %vm541, %vm554
      %vm559 = vmand %vm542, %vm553
      %vm560 = vmand %vm543, %vm554
      %v561 = vsel %vm555, 1, 0
      %v562 = vsel %vm556, 1, 0
      %v563 = vsel %vm557, 1, 0
      %v564 = vsel %vm558, 1, 0
      %v565 = vsel %vm559, 1, 0
      %v566 = vsel %vm560, 1, 0
      %v567 = vcvt.s32.f32 %v561
      %v568 = vcvt.s32.f32 %v562
      %v569 = vcvt.s32.f32 %v563
      %v570 = vcvt.s32.f32 %v564
      %v571 = vcvt.s32.f32 %v565
      %v572 = vcvt.s32.f32 %v566
      %v573 = vadd.f32 %v567, %v568
      %574 = vadd.xlane.f32.xlu0 %v573
      %v575 = vpop.xlane.xlu0 %574
      %v576 = vadd.f32 %v569, %v570
      %577 = vadd.xlane.f32.xlu0 %v576
      %v578 = vpop.xlane.xlu0 %577
      %v579 = vsel %vm361, %v571, 0.0
      %v580 = vsel %vm361, %v572, 0.0
      %v581 = vadd.f32 %v579, %v580
      %582 = vadd.xlane.f32.xlu0 %v581
      %v583 = vpop.xlane.xlu0 %582
      %584 = vst.msk [vmem:[%s313] sm:$0xff] %vm507, %v575
      %585 = vst.msk [vmem:[%s313 + $0x8] sm:$0xff] %vm507, %v578
      %586 = vst.msk [vmem:[%s313 + $0x10] sm:$0x7] %vm510, %v583
      %p587 = scmp.lt.s32.totalorder %s20, 1
      %s588 = scalar_select %p587, %s20, 1
      %p589 = scmp.lt.s32.totalorder %s21, 0
      %s590 = scalar_select %p589, %s21, 0
      %s591 = smul.addr %s590, 3
      %s592 = smul.addr %s588, 3
      %s593 = sadd.s32 %s591, %s592
      %s594 = smul.addr %s593, 8
      %s595 = scalar_lea.vmem %s2, %s594
      %p596 = scmp.lt.s32.totalorder %s20, 1
      %s597 = scalar_select %p596, %s20, 1
      %p598 = scmp.lt.s32.totalorder %s21, 0
      %s599 = scalar_select %p598, %s21, 0
      %s600 = smul.addr %s599, 3
      %s601 = smul.addr %s597, 3
      %s602 = sadd.s32 %s600, %s601
      %s603 = smul.addr %s602, 8
      %s604 = scalar_lea.vmem %s3, %s603
      %p605 = scmp.lt.s32.totalorder %s20, 1
      %s606 = scalar_select %p605, %s20, 1
      %p607 = scmp.lt.s32.totalorder %s21, 0
      %s608 = scalar_select %p607, %s21, 0
      %s609 = smul.addr %s608, 3
      %s610 = smul.addr %s606, 3
      %s611 = sadd.s32 %s609, %s610
      %s612 = smul.addr %s611, 8
      %s613 = scalar_lea.vmem %s4, %s612
      // Predicated region
      $region29: #{tpu_custom_call.1} parent=27 // pred_check
        %p614 = pneg %p104
      $region30: #{tpu_custom_call.1} parent=27 // pred_check_branch
        %616 = sbr.rel (%p614) target = $region32
      $region31: #{tpu_custom_call.1} parent=27 // pred_region
        _
      $region32: #{tpu_custom_call.1} parent=27 // pred_fallthru
        _
      // Predicated region
      $region33: #{tpu_custom_call.1} parent=27 // pred_check
        %p617 = pneg %p132
      $region34: #{tpu_custom_call.1} parent=27 // pred_check_branch
        %619 = sbr.rel (%p617) target = $region36
      $region35: #{tpu_custom_call.1} parent=27 // pred_region
        _
      $region36: #{tpu_custom_call.1} parent=27 // pred_fallthru
        _
      // Predicated region
      $region37: #{tpu_custom_call.1} parent=27 // pred_check
        %p620 = pneg %p160
      $region38: #{tpu_custom_call.1} parent=27 // pred_check_branch
        %622 = sbr.rel (%p620) target = $region40
      $region39: #{tpu_custom_call.1} parent=27 // pred_region
        _
      $region40: #{tpu_custom_call.1} parent=27 // pred_fallthru
        _
    $region28: #{tpu_custom_call.1} parent=5 // pred_fallthru
      _
    %p623 = scmp.le.s32.totalorder 2, %s11
    // Predicated region
    $region41: #{tpu_custom_call.1} parent=5 // pred_check
      %p624 = pneg %p623
    $region42: #{tpu_custom_call.1} parent=5 // pred_check_branch
      %626 = sbr.rel (%p624) target = $region44
    $region43: #{tpu_custom_call.1} parent=5 // pred_region
      %s627 = ssub.s32 %s11, 2
      // Predicated region
      $region45: #{tpu_custom_call.1} parent=43 // pred_check
        %p628 = pneg %p110
      $region46: #{tpu_custom_call.1} parent=43 // pred_check_branch
        %630 = sbr.rel (%p628) target = $region48
      $region47: #{tpu_custom_call.1} parent=43 // pred_region
        %p631 = scmp.lt.s32.totalorder %s22, 1
        %s632 = scalar_select %p631, %s22, 1
        %p633 = scmp.lt.s32.totalorder %s23, 0
        %s634 = scalar_select %p633, %s23, 0
        %s635 = smul.addr %s634, 3
        %s636 = smul.addr %s632, 3
        %s637 = sadd.s32 %s635, %s636
        %s638 = smul.addr %s637, 8
        %s639 = scalar_lea.vmem %s2, %s638
      $region48: #{tpu_custom_call.1} parent=43 // pred_fallthru
        _
      // Predicated region
      $region49: #{tpu_custom_call.1} parent=43 // pred_check
        %p640 = pneg %p138
      $region50: #{tpu_custom_call.1} parent=43 // pred_check_branch
        %642 = sbr.rel (%p640) target = $region52
      $region51: #{tpu_custom_call.1} parent=43 // pred_region
        %p643 = scmp.lt.s32.totalorder %s22, 1
        %s644 = scalar_select %p643, %s22, 1
        %p645 = scmp.lt.s32.totalorder %s23, 0
        %s646 = scalar_select %p645, %s23, 0
        %s647 = smul.addr %s646, 3
        %s648 = smul.addr %s644, 3
        %s649 = sadd.s32 %s647, %s648
        %s650 = smul.addr %s649, 8
        %s651 = scalar_lea.vmem %s3, %s650
      $region52: #{tpu_custom_call.1} parent=43 // pred_fallthru
        _
      // Predicated region
      $region53: #{tpu_custom_call.1} parent=43 // pred_check
        %p652 = pneg %p166
      $region54: #{tpu_custom_call.1} parent=43 // pred_check_branch
        %654 = sbr.rel (%p652) target = $region56
      $region55: #{tpu_custom_call.1} parent=43 // pred_region
        %p655 = scmp.lt.s32.totalorder %s22, 1
        %s656 = scalar_select %p655, %s22, 1
        %p657 = scmp.lt.s32.totalorder %s23, 0
        %s658 = scalar_select %p657, %s23, 0
        %s659 = smul.addr %s658, 3
        %s660 = smul.addr %s656, 3
        %s661 = sadd.s32 %s659, %s660
        %s662 = smul.addr %s661, 8
        %s663 = scalar_lea.vmem %s4, %s662
      $region56: #{tpu_custom_call.1} parent=43 // pred_fallthru
        _
    $region44: #{tpu_custom_call.1} parent=5 // pred_fallthru
      _
  $region6: #{tpu_custom_call.1} parent=0 // loop_footer
    %s15 = sadd.s32 1, %s11
  $region7: #{tpu_custom_call.1} parent=0 // loop_footer_branch
    %10 = sbr.rel target = $region3
  $region8: #{tpu_custom_call.1} parent=0 // loop_exit
    _

</llo_original>
